<compile_context>
chip_gen: v7x
topology: tpu7x:2x2x1
jax: 0.10.0
libtpu: 0.0.40
codegen_flags: <defaults>
</compile_context>

<pallas_src>
import functools

import jax
import jax.numpy as jnp
from jax.experimental import pallas as pl
from jax.experimental.pallas import tpu as pltpu

_LANE = 128
_SUBLANE = 8
# ~1-2 MiB of HBM traffic per grid step for the logits buffer.
_TARGET_TILE_HBM_BYTES = 2 << 20
# Conservative VMEM working-set budget (fits v7x's 64 MiB physical VMEM with
# plenty of headroom once the scoped limit is raised explicitly).
_VMEM_WORKING_BUDGET = 20 << 20
_F32_TEMPS = 5  # assumed live (tn, cpad) f32 temporaries in the kernel body


def _round_up(x, m):
    return (x + m - 1) // m * m


def _ce_label_smoothing_kernel(pred_ref, target_ref, out_ref, *,
                               eps: float, n_total: int, tn: int):
    """One batch-tile of label-smoothed cross entropy -> per-tile partial sum.

    pred_ref:   (tn, C)  logits, incoming dtype (cast to f32 in-kernel)
    target_ref: (tn, 1)  i32 class ids
    out_ref:    (8, 128) f32; this tile's loss partial-sum stored at [0, 0]
    """
    i = pl.program_id(0)

    logits = pred_ref[...].astype(jnp.float32)                       # (tn, C)
    tn_, c = logits.shape

    # Fused label-smoothed CE (logp is never materialized):
    #   q_c    = (1-eps)*onehot_c + eps/C        (sum_c q_c == 1)
    #   loss_i = lse_i - sum_c q_c * shifted[i, c]
    m = jnp.max(logits, axis=1, keepdims=True)                       # (tn, 1)
    shifted = logits - m                                             # (tn, C)
    lse = jnp.log(jnp.sum(jnp.exp(shifted), axis=1, keepdims=True))  # (tn, 1)

    class_ids = jax.lax.broadcasted_iota(jnp.int32, (tn_, c), 1)     # (tn, C)
    onehot = class_ids == target_ref[...]                            # (tn, C)
    # single weighted class-axis reduction (replaces tgt_shift + sum_shift)
    q = jnp.where(onehot, 1.0 - eps + eps / c, eps / c)              # (tn, C)
    weighted = jnp.sum(shifted * q, axis=1, keepdims=True)           # (tn, 1)
    per_sample = lse - weighted                                      # (tn, 1)

    def _write(vals):
        partial = jnp.sum(vals)
        r = jax.lax.broadcasted_iota(jnp.int32, (_SUBLANE, _LANE), 0)
        l = jax.lax.broadcasted_iota(jnp.int32, (_SUBLANE, _LANE), 1)
        # full (8, 128) unmasked lane-dense store; wrapper sums the whole array
        out_ref[...] = jnp.where((r == 0) & (l == 0), partial, 0.0)

    if n_total % tn == 0:
        _write(per_sample)
    else:
        last = pl.num_programs(0) - 1

        @pl.when(i != last)
        def _full_tile():
            _write(per_sample)

        @pl.when(i == last)
        def _tail_tile():
            # Mask rows past the true batch size (only on the last tile).
            row_ids = i * tn + jax.lax.broadcasted_iota(jnp.int32, (tn_, 1), 0)
            _write(jnp.where(row_ids < n_total, per_sample, 0.0))


def _pick_tile_rows(n, c, itemsize):
    """Tile rows: ~1-2 MiB HBM per step, capped by a padded-lane VMEM budget."""
    cpad = _round_up(c, _LANE)
    hbm_row = c * itemsize
    vmem_row = cpad * (2 * itemsize + _F32_TEMPS * 4)  # dbl-buffered in + f32 temps
    desired = max(_SUBLANE, _TARGET_TILE_HBM_BYTES // hbm_row)
    budget = max(_SUBLANE, _VMEM_WORKING_BUDGET // vmem_row)
    tn = int(min(desired, budget, n))
    if tn < n:
        tn = max(_SUBLANE, (tn // _SUBLANE) * _SUBLANE)  # sublane multiple
    return tn


@functools.lru_cache(maxsize=None)
def _build_loss_call(n, c, tn, eps, dtype_name):
    itemsize = jnp.dtype(dtype_name).itemsize
    cpad = _round_up(c, _LANE)
    num_tiles = int(pl.cdiv(n, tn))

    kernel = functools.partial(_ce_label_smoothing_kernel,
                               eps=eps, n_total=n, tn=tn)

    # Explicit scoped-VMEM limit: covers double-buffered inputs + f32 working
    # set with headroom, but stays well under v7x's 64 MiB physical VMEM.
    est_vmem = tn * cpad * (2 * itemsize + _F32_TEMPS * 4) + (4 << 20)
    vmem_limit = int(min(max(est_vmem, 32 << 20), 40 << 20))

    cost = pl.CostEstimate(
        flops=6 * n * c,
        transcendentals=n * c,
        bytes_accessed=n * c * itemsize + n * 4 + num_tiles * _SUBLANE * _LANE * 4,
    )

    return pl.pallas_call(
        kernel,
        out_shape=jax.ShapeDtypeStruct((num_tiles * _SUBLANE, _LANE), jnp.float32),
        grid=(num_tiles,),
        in_specs=[
            pl.BlockSpec((tn, c), lambda i: (i, 0)),   # logits tile (native dtype)
            pl.BlockSpec((tn, 1), lambda i: (i, 0)),   # target ids tile
        ],
        out_specs=pl.BlockSpec((_SUBLANE, _LANE), lambda i: (i, 0)),
        compiler_params=pltpu.CompilerParams(
            dimension_semantics=("parallel",),          # independent tiles -> both v7x TCs
            vmem_limit_bytes=vmem_limit),
        cost_estimate=cost,
    )


def get_loss_pallas(pred, target, trans_feat=None, *,
                    label_smoothing=0.1, block_rows=None):
    """Pallas equivalent of get_loss().forward(pred, target, trans_feat)."""
    del trans_feat  # unused, exactly as in the PyTorch module
    n, c = pred.shape
    target_2d = target.astype(jnp.int32).reshape(n, 1)

    itemsize = jnp.dtype(pred.dtype).itemsize
    if block_rows is None:
        tn = _pick_tile_rows(int(n), int(c), itemsize)
    else:
        tn = int(min(block_rows, n))
        if tn < n:
            tn = max(_SUBLANE, (tn // _SUBLANE) * _SUBLANE)

    call = _build_loss_call(int(n), int(c), int(tn), float(label_smoothing),
                            jnp.dtype(pred.dtype).name)
    partials = call(pred, target_2d)               # (num_tiles*8, 128) f32
    # Tiny final reduction + mean in XLA keeps the grid axis fully parallel.
    return jnp.sum(partials) * jnp.float32(1.0 / n)


def _reference_loss(pred, target, eps=0.1):
    # pure-JAX reference of torch.nn.CrossEntropyLoss(label_smoothing=eps)
    n, c = pred.shape
    logp = jax.nn.log_softmax(pred.astype(jnp.float32), axis=-1)
    one_hot = jax.nn.one_hot(target, c, dtype=jnp.float32)
    q = (1.0 - eps) * one_hot + eps / c
    return jnp.mean(-jnp.sum(q * logp, axis=-1))


if __name__ == "__main__":
    key = jax.random.PRNGKey(0)
    k_pred, k_tgt, k_tf, k_pred2, k_tgt2 = jax.random.split(key, 5)

    # Case 1: small classifier-head shapes (single tile).
    N, C = 8, 32
    pred = jax.random.normal(k_pred, (N, C), dtype=jnp.float32)
    target = jax.random.randint(k_tgt, (N,), 0, C, dtype=jnp.int32)
    trans_feat = jax.random.normal(k_tf, (N, 4, 4), dtype=jnp.float32)  # unused

    loss = jax.block_until_ready(get_loss_pallas(pred, target, trans_feat))
    ref = _reference_loss(pred, target)
    assert jnp.allclose(loss, ref, atol=1e-5, rtol=1e-5), (loss, ref)

    # Case 2: multi-tile grid with a masked tail tile (exercises the parallel
    # per-tile partial-sum path and the last-tile pl.when mask).
    N2, C2 = 100, 40
    pred2 = jax.random.normal(k_pred2, (N2, C2), dtype=jnp.float32)
    target2 = jax.random.randint(k_tgt2, (N2,), 0, C2, dtype=jnp.int32)
    loss2 = jax.block_until_ready(
        get_loss_pallas(pred2, target2, None, block_rows=32))
    ref2 = _reference_loss(pred2, target2)
    assert jnp.allclose(loss2, ref2, atol=1e-5, rtol=1e-5), (loss2, ref2)

    print("KERNEL_OK")
</pallas_src>

<mosaic_0001>
module attributes {stable_mosaic.version = 11 : i64} {
  func.func @_ce_label_smoothing_kernel(%arg0: i32, %arg1: memref<8x32xf32, #tpu.memory_space<vmem>>, %arg2: memref<8x1xi32, #tpu.memory_space<vmem>>, %arg3: memref<8x128xf32, #tpu.memory_space<vmem>>) attributes {dimension_semantics = [#tpu.dimension_semantics<parallel>], iteration_bounds = array<i64: 1>, scalar_prefetch = 0 : i64, scratch_operands = 0 : i64, tpu.core_type = #tpu.core_type<tc>, window_params = [{transform_indices = @transform_0, window_bounds = array<i64: 8, 32>}, {transform_indices = @transform_1, window_bounds = array<i64: 8, 1>}, {transform_indices = @transform_2, window_bounds = array<i64: 8, 128>}]} {
    %c0 = arith.constant 0 : index
    %c0_0 = arith.constant 0 : index
    %0 = vector.load %arg1[%c0, %c0_0] : memref<8x32xf32, #tpu.memory_space<vmem>>, vector<8x32xf32>
    %cst = arith.constant dense<0xFF800000> : vector<8xf32>
    %1 = vector.multi_reduction <maximumf>, %0, %cst [1] : vector<8x32xf32> to vector<8xf32>
    %2 = vector.shape_cast %1 : vector<8xf32> to vector<8x1xf32>
    %3 = vector.broadcast %2 : vector<8x1xf32> to vector<8x32xf32>
    %4 = arith.subf %0, %3 : vector<8x32xf32>
    %5 = math.exp %4 : vector<8x32xf32>
    %cst_1 = arith.constant dense<0.000000e+00> : vector<8xf32>
    %6 = vector.multi_reduction <add>, %5, %cst_1 [1] : vector<8x32xf32> to vector<8xf32>
    %7 = vector.shape_cast %6 : vector<8xf32> to vector<8x1xf32>
    %8 = math.log %7 : vector<8x1xf32>
    %9 = tpu.iota {dimensions = array<i32: 1>} : vector<8x32xi32>
    %c0_2 = arith.constant 0 : index
    %c0_3 = arith.constant 0 : index
    %10 = vector.load %arg2[%c0_2, %c0_3] : memref<8x1xi32, #tpu.memory_space<vmem>>, vector<8x1xi32>
    %11 = vector.broadcast %10 : vector<8x1xi32> to vector<8x32xi32>
    %12 = arith.cmpi eq, %9, %11 : vector<8x32xi32>
    %cst_4 = arith.constant 0.903124988 : f32
    %cst_5 = arith.constant 3.125000e-03 : f32
    %13 = vector.broadcast %cst_4 : f32 to vector<8x32xf32>
    %14 = vector.broadcast %cst_5 : f32 to vector<8x32xf32>
    %15 = arith.select %12, %13, %14 : vector<8x32xi1>, vector<8x32xf32>
    %16 = arith.mulf %4, %15 : vector<8x32xf32>
    %cst_6 = arith.constant dense<0.000000e+00> : vector<8xf32>
    %17 = vector.multi_reduction <add>, %16, %cst_6 [1] : vector<8x32xf32> to vector<8xf32>
    %18 = vector.shape_cast %17 : vector<8xf32> to vector<8x1xf32>
    %19 = arith.subf %8, %18 : vector<8x1xf32>
    %20 = vector.shape_cast %19 : vector<8x1xf32> to vector<1x8x1xf32>
    %cst_7 = arith.constant dense<0.000000e+00> : vector<1xf32>
    %21 = vector.multi_reduction <add>, %20, %cst_7 [1, 2] : vector<1x8x1xf32> to vector<1xf32>
    %22 = vector.shape_cast %21 : vector<1xf32> to vector<1x1x1xf32>
    %23 = vector.extract %22[0, 0, 0] : f32 from vector<1x1x1xf32>
    %24 = tpu.iota {dimensions = array<i32: 0>} : vector<8x128xi32>
    %25 = tpu.iota {dimensions = array<i32: 1>} : vector<8x128xi32>
    %c0_i32 = arith.constant 0 : i32
    %26 = vector.broadcast %c0_i32 : i32 to vector<8x128xi32>
    %27 = arith.cmpi eq, %24, %26 : vector<8x128xi32>
    %c0_i32_8 = arith.constant 0 : i32
    %28 = vector.broadcast %c0_i32_8 : i32 to vector<8x128xi32>
    %29 = arith.cmpi eq, %25, %28 : vector<8x128xi32>
    %30 = arith.andi %27, %29 : vector<8x128xi1>
    %cst_9 = arith.constant 0.000000e+00 : f32
    %31 = vector.broadcast %23 : f32 to vector<8x128xf32>
    %32 = vector.broadcast %cst_9 : f32 to vector<8x128xf32>
    %33 = arith.select %30, %31, %32 : vector<8x128xi1>, vector<8x128xf32>
    %c0_10 = arith.constant 0 : index
    %c0_11 = arith.constant 0 : index
    %34 = vector.load %arg3[%c0_10, %c0_11] : memref<8x128xf32, #tpu.memory_space<vmem>>, vector<8x128xf32>
    tpu.vector_store %arg3[%c0_10, %c0_11], %33 {strides = array<i32>} : memref<8x128xf32, #tpu.memory_space<vmem>>, vector<8x128xf32>,
    return
  }
  func.func @transform_0(%arg0: i32) -> (i32, i32) {
    %c0_i32 = arith.constant 0 : i32
    %c0_i32_0 = arith.constant 0 : i32
    return %arg0, %c0_i32 : i32, i32
  }
  func.func @transform_1(%arg0: i32) -> (i32, i32) {
    %c0_i32 = arith.constant 0 : i32
    %c0_i32_0 = arith.constant 0 : i32
    return %arg0, %c0_i32 : i32, i32
  }
  func.func @transform_2(%arg0: i32) -> (i32, i32) {
    %c0_i32 = arith.constant 0 : i32
    %c0_i32_0 = arith.constant 0 : i32
    return %arg0, %c0_i32 : i32, i32
  }
}

</mosaic_0001>

<llo_original>
// kernel: tpu_custom_call.1
$region0: #{tpu_custom_call.1}
  #allocation0 [shape = 'u32[]', space=smem, size = 0x4, offset = 0x4, fixed_abs, tag = 'smem constant byte address 0x4 - core index']
  #allocation1 [shape = 'u32[144,128]{1,0:T(1,128)}', space=vmem, size = 0x12000, scoped, tag = 'internal scratch']
  %s0 = inlined_call_operand.vmem [shape: f32[8,32], index: 0, kind: input, shape index: {}]
  %s1 = inlined_call_operand.vmem [shape: s32[8,1], index: 1, kind: input, shape index: {}]
  %s2 = inlined_call_operand.hbm [shape: f32[8,128], index: 2, kind: output, shape index: {}]
  %s3 = sld [smem:[#allocation0]]
  $region18: #{tpu_custom_call.1} parent=0
    _
  %s5 = ssub.s32 1, %s3
  %s6 = scalar_select 0, %s5, %s3
  $region1: #{tpu_custom_call.1} parent=0
    #allocation2 [shape = 'u8[4096]{0}', space=vmem, size = 0x1000, scoped, tag = 'output window, operand 0, single buffered']
    #allocation3 [shape = 's32[1]{0}', space=sflag, size = 0x4, scoped, tag = 'scoped memory for tpu_custom_call.1']
    %7 = vsyncpa [#allocation3], 0
    // Predicated region
    $region2: #{tpu_custom_call.1} parent=1 // pred_check
      _
    $region3: #{tpu_custom_call.1} parent=1 // pred_check_branch
      %9 = sbr.rel (0) target = $region5
    $region4: #{tpu_custom_call.1} parent=1 // pred_region
      _
    $region5: #{tpu_custom_call.1} parent=1 // pred_fallthru
      _
    // Predicated region
    $region6: #{tpu_custom_call.1} parent=1 // pred_check
      _
    $region7: #{tpu_custom_call.1} parent=1 // pred_check_branch
      %11 = sbr.rel (0) target = $region9
    $region8: #{tpu_custom_call.1} parent=1 // pred_region
      _
    $region9: #{tpu_custom_call.1} parent=1 // pred_fallthru
      _
    %v12 = vld [vmem:[%s0] sm:$0xff]
    %vm13 = vcmask 261120
    %v14 = vsel %vm13, %v12, -inf
    %15 = vmax.xlane.f32.xlu0 %v14
    %v16 = vpop.xlane.xlu0 %15
    %v17 = vsub.f32 %v12, %v16
    %v18 = vmul.f32 %v17, 1.442695
    %v19 = vpow.pop %v18
    %v20 = vsel %vm13, %v19, 0.0
    %21 = vadd.xlane.f32.xlu0 %v20
    %v22 = vpop.xlane.xlu0 %21
    %v23 = vlog2.pop %v22
    %v24 = vmul.f32 %v23, 0.6931472
    %v25 = vlaneseq
    %v26 = vand.u32 %v25, 127
    %v27 = vld [vmem:[%s1] sm:$0xff]
    %28 = vset.pattern.permute.xlu0 0
    %29 = vperm.xlu0 %28, %v27
    %v30 = vpop.permute.xlu0 %29
    %vm31 = vcmp.eq.s32.totalorder %v26, %v30
    %v32 = vsel %vm31, 0.903125, 0.003125
    %v33 = vmul.f32 %v17, %v32
    %v34 = vsel %vm13, %v33, 0.0
    %35 = vadd.xlane.f32.xlu0 %v34
    %v36 = vpop.xlane.xlu0 %35
    %v37 = vsub.f32 %v24, %v36
    %vm38 = vcmask 7168
    %v39 = vsel %vm38, %v37, 0.0
    %40 = vadd.xlane.f32.xlu0 %v39
    %v41 = vpop.xlane.xlu0 %40
    %v42 = vrot.slane %v41, 4
    %v43 = vadd.f32 %v41, %v42
    %v44 = vrot.slane %v43, 2
    %v45 = vadd.f32 %v43, %v44
    %v46 = vrot.slane %v45, 1
    %v47 = vadd.f32 %v45, %v46
    %s48 = vtos %v47
    %v49 = vlaneseq
    %v50 = vshrl.u32 %v49, 7
    %vm51 = vcmp.eq.s32.totalorder %v50, 0
    %vm52 = vcmp.eq.s32.totalorder %v26, 0
    %vm53 = vmand %vm51, %vm52
    %v54 = vstv %s48
    %v55 = vsel %vm53, %v54, 0.0
    %56 = vst [vmem:[#allocation2] sm:$0xff] %v55
    // Predicated region
    $region10: #{tpu_custom_call.1} parent=1 // pred_check
      _
    $region11: #{tpu_custom_call.1} parent=1 // pred_check_branch
      %58 = sbr.rel (0) target = $region13
    $region12: #{tpu_custom_call.1} parent=1 // pred_region
      %s60 = ssub.s32 128, 128
      %61 = vsyncadd [#allocation3], %s60
      %s63 = sshll.u32 [#allocation2], 4
      %s64 = int_to_ptr.vmem [resolvable:$true] %s63
      %66 = dma.vmem_to_hbm [thread:$0]  %s64, 128, %s2, [#allocation3]
    $region13: #{tpu_custom_call.1} parent=1 // pred_fallthru
      _
    // Predicated region
    $region14: #{tpu_custom_call.1} parent=1 // pred_check
      _
    $region15: #{tpu_custom_call.1} parent=1 // pred_check_branch
      %68 = sbr.rel (0) target = $region17
    $region16: #{tpu_custom_call.1} parent=1 // pred_region
      %69 = dma.done [#allocation3], 128
    $region17: #{tpu_custom_call.1} parent=1 // pred_fallthru
      _
    %70 = vsyncpa [#allocation3], 1

</llo_original>
